<compile_context>
chip_gen: v6e
topology: v6e:2x2x1
jax: 0.10.0
libtpu: 0.0.40
codegen_flags: <defaults>
</compile_context>

<pallas_src>
import functools
import math

import jax
import jax.numpy as jnp
from jax.experimental import pallas as pl
from jax.experimental.pallas import tpu as pltpu

_INV_SQRT2 = 1.0 / math.sqrt(2.0)


# --------------------------------------------------------------------------
# VMEM accounting / tile selection
# --------------------------------------------------------------------------
def _round_up(x, m):
    return (x + m - 1) // m * m


def _sublane_multiple(dtype):
    # f32 -> 8, bf16 -> 16, int8/fp8 -> 32 (sub-32-bit dtypes pack along sublanes).
    return max(8, 32 // jnp.dtype(dtype).itemsize)


def _padded_tile_bytes(rows, cols, dtype):
    it = jnp.dtype(dtype).itemsize
    return _round_up(rows, _sublane_multiple(dtype)) * _round_up(cols, 128) * it


def _vmem_budget():
    """Return (physical_vmem_bytes, planned_working_set_budget_bytes)."""
    try:
        cap = int(pltpu.get_tpu_info().vmem_capacity_bytes)
    except Exception:
        cap = 64 << 20                  # conservative: v7x has 64 MiB per TC
    # ~60% of physical VMEM (≈38 MiB on v7x), capped at 64 MiB on v5e/v6e.
    return cap, min(int(cap * 0.6), 64 << 20)


def _per_col_bytes(C, hidden, in_dtype, mm_dtype):
    """VMEM bytes per spatial column of one tile: double-buffered x/out blocks
    (sublane-padded C) plus the f32 and matmul-dtype intermediates."""
    it_in = jnp.dtype(in_dtype).itemsize
    it_mm = jnp.dtype(mm_dtype).itemsize
    Cp_in = _round_up(C, _sublane_multiple(in_dtype))
    Hp_mm = _round_up(hidden, _sublane_multiple(mm_dtype))
    return (2 * 2 * Cp_in * it_in            # x + out tiles, double-buffered
            + _round_up(hidden, 8) * 4       # f32 h (post fc1 / GELU)
            + Hp_mm * it_mm                  # h cast back to the MXU operand dtype
            + _round_up(C, 8) * 4)           # f32 y before the output cast


def _pick_tiles(N, C, HW, hidden, in_dtype, mm_dtype, tile_budget):
    """Pick (Nb, t_hw, HW_eff): batch block, spatial tile, (maybe padded) H*W."""
    per_col = _per_col_bytes(C, hidden, in_dtype, mm_dtype)

    HW_eff = HW
    if HW % 128 != 0 and HW * per_col > tile_budget:
        # Full-extent spatial block would blow the budget: pad so we can tile.
        HW_eff = _round_up(HW, 128)

    if HW_eff % 128 == 0:
        t_cands = [t for t in range(128, HW_eff + 1, 128) if HW_eff % t == 0]
    else:
        t_cands = [HW_eff]                            # full extent (tiny HW)
    n_cands = [nb for nb in range(1, min(N, 8) + 1) if N % nb == 0]

    t_min = min(t_cands)
    best = None                                       # (key, Nb, t_hw)
    for t in t_cands:
        for nb in n_cands:
            bps = nb * t * per_col                    # bytes of tiles per step
            if bps > tile_budget and not (t == t_min and nb == 1):
                continue                              # keep the minimal fallback
            steps = (N // nb) * (HW_eff // t)
            # Prefer: (a) grid not collapsing below 4 steps, (b) fat steps,
            # (c) larger contiguous spatial tiles.
            key = (1 if steps >= 4 else 0, min(bps, tile_budget), t)
            if best is None or key > best[0]:
                best = (key, nb, t)
    _, Nb, t_hw = best
    return Nb, t_hw, HW_eff


# --------------------------------------------------------------------------
# Kernel
# --------------------------------------------------------------------------
def conv_mlp_kernel(x_ref, w1_ref, b1_ref, w2_ref, b2_ref, o_ref, *, approx_gelu):
    # x_ref / o_ref: (Nb, C, t_hw) channels-first tiles (lane axis = spatial).
    # Weights are resident (constant index_map, single-buffered).
    w1 = w1_ref[...]                       # (hidden, C)  matmul dtype (BN folded)
    b1 = b1_ref[...]                       # (hidden, 1)  f32          (BN folded)
    w2 = w2_ref[...]                       # (C, hidden)  matmul dtype
    b2 = b2_ref[...]                       # (C, 1)       f32
    nb = x_ref.shape[0]
    for n in range(nb):                    # static unroll; Nb capped small
        x = x_ref[n].astype(w1.dtype)      # (C, t_hw)
        h = jnp.dot(w1, x, preferred_element_type=jnp.float32) + b1
        if approx_gelu:
            h = jax.nn.gelu(h, approximate=True)                 # tanh form -> EUP
        else:
            h = 0.5 * h * (1.0 + jax.lax.erf(h * _INV_SQRT2))    # exact nn.GELU()
        y = jnp.dot(w2, h.astype(w2.dtype),
                    preferred_element_type=jnp.float32) + b2     # (C, t_hw)
        o_ref[n] = y.astype(o_ref.dtype)


# --------------------------------------------------------------------------
# Wrapper
# --------------------------------------------------------------------------
def conv_mlp_pallas(x_nchw, params, *, eps=1e-5, spatial_tile=None,
                    approx_gelu=False, matmul_dtype=None, donate_input=False):
    """x_nchw: (N, C, H, W). Returns (N, C, H, W), matching the torch module."""
    N, C, H, W = x_nchw.shape
    hidden = params["w1"].shape[1]
    HW = H * W
    in_dtype = jnp.dtype(x_nchw.dtype)
    mm_dtype = jnp.dtype(matmul_dtype) if matmul_dtype is not None else in_dtype

    # ---- Fold BatchNorm2d (eval mode / running stats) into fc1 --------------
    # (x*s + t) @ W1 + b1 == x @ (s[:,None]*W1) + (t @ W1 + b1)
    inv_std = 1.0 / jnp.sqrt(params["running_var"].astype(jnp.float32) + eps)
    scale = params["gamma"].astype(jnp.float32) * inv_std                   # (C,)
    shift = (params["beta"].astype(jnp.float32)
             - params["running_mean"].astype(jnp.float32) * scale)          # (C,)

    w1 = params["w1"].astype(jnp.float32)     # (C, hidden)
    b1 = params["b1"].astype(jnp.float32)     # (hidden,)
    w2 = params["w2"].astype(jnp.float32)     # (hidden, C)
    b2 = params["b2"].astype(jnp.float32)     # (C,)

    w1t = (w1 * scale[:, None]).T.astype(mm_dtype)     # (hidden, C)
    b1f = (shift @ w1 + b1).reshape(hidden, 1)         # (hidden, 1) f32
    w2t = w2.T.astype(mm_dtype)                        # (C, hidden)
    b2f = b2.reshape(C, 1)                             # (C, 1) f32

    # ---- Hardware-aware tile selection ---------------------------------------
    vmem_cap, ws_budget = _vmem_budget()
    weight_bytes = (_padded_tile_bytes(hidden, C, mm_dtype)
                    + _padded_tile_bytes(C, hidden, mm_dtype)
                    + _padded_tile_bytes(hidden, 1, jnp.float32)
                    + _padded_tile_bytes(C, 1, jnp.float32))
    tile_budget = max(ws_budget - weight_bytes, 2 << 20)

    if spatial_tile is not None:
        assert HW % spatial_tile == 0, "spatial_tile must divide H*W"
        assert spatial_tile % 128 == 0 or spatial_tile == HW, \
            "spatial_tile must be a multiple of 128 (or the full H*W extent)"
        Nb, t_hw, HW_eff = 1, int(spatial_tile), HW
    else:
        Nb, t_hw, HW_eff = _pick_tiles(N, C, HW, hidden, in_dtype, mm_dtype,
                                       tile_budget)

    x3 = x_nchw.reshape(N, C, HW)             # free reshape; NCHW kept native
    if HW_eff != HW:
        x3 = jnp.pad(x3, ((0, 0), (0, 0), (0, HW_eff - HW)))

    grid = (N // Nb, HW_eff // t_hw)
    vmem_limit = int(min(vmem_cap, ws_budget + (8 << 20)))
    kernel = functools.partial(conv_mlp_kernel, approx_gelu=approx_gelu)
    io_alias = {0: 0} if (donate_input and HW_eff == HW) else {}

    def _call(weight_mode):
        def wspec(shape):
            if weight_mode is None:
                return pl.BlockSpec(shape, lambda n, j: (0, 0))
            return pl.BlockSpec(shape, lambda n, j: (0, 0),
                                pipeline_mode=weight_mode)
        return pl.pallas_call(
            kernel,
            out_shape=jax.ShapeDtypeStruct((N, C, HW_eff), in_dtype),
            grid_spec=pltpu.PrefetchScalarGridSpec(
                num_scalar_prefetch=0,
                grid=grid,
                in_specs=[
                    pl.BlockSpec((Nb, C, t_hw), lambda n, j: (n, 0, j)),  # x tile
                    wspec((hidden, C)),        # w1t (BN folded), resident
                    wspec((hidden, 1)),        # b1  (BN folded), resident
                    wspec((C, hidden)),        # w2t, resident
                    wspec((C, 1)),             # b2, resident
                ],
                out_specs=pl.BlockSpec((Nb, C, t_hw), lambda n, j: (n, 0, j)),
            ),
            compiler_params=pltpu.CompilerParams(
                dimension_semantics=("parallel", "parallel"),
                vmem_limit_bytes=vmem_limit),
            input_output_aliases=io_alias,
        )(x3, w1t, b1f, w2t, b2f)

    try:
        out3 = _call(pl.Buffered(1))          # resident weights: single-buffered
    except Exception:
        # TODO(synk): this jax build rejects pipeline_mode=pl.Buffered(1);
        # fall back to default (double-buffered) weight blocks.
        out3 = _call(None)

    if HW_eff != HW:
        out3 = out3[:, :, :HW]
    return out3.reshape(N, C, H, W)


# --------------------------------------------------------------------------
# Pure-JAX reference (literal module math, eval-mode BN) + demo
# --------------------------------------------------------------------------
def conv_mlp_ref(x_nchw, params, eps=1e-5):
    inv_std = 1.0 / jnp.sqrt(params["running_var"] + eps)
    scale = params["gamma"] * inv_std
    shift = params["beta"] - params["running_mean"] * scale
    x = jnp.transpose(x_nchw, (0, 2, 3, 1)).astype(jnp.float32)
    x = x * scale + shift
    h = x @ params["w1"] + params["b1"]
    h = 0.5 * h * (1.0 + jax.lax.erf(h / math.sqrt(2.0)))
    y = h @ params["w2"] + params["b2"]
    return jnp.transpose(y, (0, 3, 1, 2)).astype(x_nchw.dtype)


def init_params(key, dim, hidden_dim):
    ks = jax.random.split(key, 6)
    # Conv2d(dim, hidden, 1).weight has shape (hidden, dim, 1, 1); stored here
    # in matmul form w1: (dim, hidden), w2: (hidden, dim).
    w1 = jax.random.normal(ks[0], (dim, hidden_dim), jnp.float32) * 0.1
    b1 = jax.random.normal(ks[1], (hidden_dim,), jnp.float32) * 0.1
    w2 = jax.random.normal(ks[2], (hidden_dim, dim), jnp.float32) * 0.1
    b2 = jax.random.normal(ks[3], (dim,), jnp.float32) * 0.1
    gamma = 1.0 + 0.1 * jax.random.normal(ks[4], (dim,), jnp.float32)
    beta = 0.1 * jax.random.normal(ks[5], (dim,), jnp.float32)
    running_mean = jnp.linspace(-0.5, 0.5, dim, dtype=jnp.float32)
    running_var = jnp.linspace(0.5, 1.5, dim, dtype=jnp.float32)
    return dict(w1=w1, b1=b1, w2=w2, b2=b2, gamma=gamma, beta=beta,
                running_mean=running_mean, running_var=running_var)


if __name__ == "__main__":
    dim, hidden_dim = 4, 32
    N, H, W = 2, 16, 16

    key = jax.random.PRNGKey(0)
    k_x, k_p = jax.random.split(key)
    x = jax.random.normal(k_x, (N, dim, H, W), jnp.float32)
    params = init_params(k_p, dim, hidden_dim)

    out = jax.block_until_ready(conv_mlp_pallas(x, params))
    ref = conv_mlp_ref(x, params)

    assert out.shape == (N, dim, H, W)
    assert jnp.allclose(out, ref, atol=1e-4, rtol=1e-4), \
        float(jnp.max(jnp.abs(out - ref)))

    print("KERNEL_OK")
</pallas_src>

<mosaic_0001>
module attributes {stable_mosaic.version = 11 : i64} {
  func.func @conv_mlp_kernel(%arg0: i32, %arg1: i32, %arg2: memref<1x4x128xf32, #tpu.memory_space<vmem>>, %arg3: memref<32x4xf32, #tpu.memory_space<vmem>>, %arg4: memref<32x1xf32, #tpu.memory_space<vmem>>, %arg5: memref<4x32xf32, #tpu.memory_space<vmem>>, %arg6: memref<4x1xf32, #tpu.memory_space<vmem>>, %arg7: memref<1x4x128xf32, #tpu.memory_space<vmem>>) attributes {dimension_semantics = [#tpu.dimension_semantics<parallel>, #tpu.dimension_semantics<parallel>], iteration_bounds = array<i64: 2, 2>, scalar_prefetch = 0 : i64, scratch_operands = 0 : i64, tpu.core_type = #tpu.core_type<tc>, window_params = [{transform_indices = @transform_0, window_bounds = array<i64: 1, 4, 128>}, {pipeline_mode = #tpu.pipeline_mode<synchronous>, transform_indices = @transform_1, window_bounds = array<i64: 32, 4>}, {pipeline_mode = #tpu.pipeline_mode<synchronous>, transform_indices = @transform_2, window_bounds = array<i64: 32, 1>}, {pipeline_mode = #tpu.pipeline_mode<synchronous>, transform_indices = @transform_3, window_bounds = array<i64: 4, 32>}, {pipeline_mode = #tpu.pipeline_mode<synchronous>, transform_indices = @transform_4, window_bounds = array<i64: 4, 1>}, {transform_indices = @transform_5, window_bounds = array<i64: 1, 4, 128>}]} {
    %c0 = arith.constant 0 : index
    %c0_0 = arith.constant 0 : index
    %0 = vector.load %arg3[%c0, %c0_0] : memref<32x4xf32, #tpu.memory_space<vmem>>, vector<32x4xf32>
    %c0_1 = arith.constant 0 : index
    %c0_2 = arith.constant 0 : index
    %1 = vector.load %arg4[%c0_1, %c0_2] : memref<32x1xf32, #tpu.memory_space<vmem>>, vector<32x1xf32>
    %c0_3 = arith.constant 0 : index
    %c0_4 = arith.constant 0 : index
    %2 = vector.load %arg5[%c0_3, %c0_4] : memref<4x32xf32, #tpu.memory_space<vmem>>, vector<4x32xf32>
    %c0_5 = arith.constant 0 : index
    %c0_6 = arith.constant 0 : index
    %3 = vector.load %arg6[%c0_5, %c0_6] : memref<4x1xf32, #tpu.memory_space<vmem>>, vector<4x1xf32>
    %c0_7 = arith.constant 0 : index
    %c0_8 = arith.constant 0 : index
    %c0_9 = arith.constant 0 : index
    %4 = vector.load %arg2[%c0_7, %c0_8, %c0_9] : memref<1x4x128xf32, #tpu.memory_space<vmem>>, vector<1x4x128xf32>
    %5 = vector.shape_cast %4 : vector<1x4x128xf32> to vector<4x128xf32>
    %cst = arith.constant dense<0.000000e+00> : vector<32x128xf32>
    %6 = tpu.matmul %0, %5, %cst {dimension_numbers = #tpu.dot_dimension_numbers<[1], [0], [0], [1], [0, 0, 1, 1], [], []>} : vector<32x4xf32>, vector<4x128xf32>, vector<32x128xf32> -> vector<32x128xf32>
    %7 = vector.broadcast %1 : vector<32x1xf32> to vector<32x128xf32>
    %8 = arith.addf %6, %7 : vector<32x128xf32>
    %cst_10 = arith.constant 5.000000e-01 : f32
    %9 = vector.broadcast %cst_10 : f32 to vector<32x128xf32>
    %10 = arith.mulf %9, %8 : vector<32x128xf32>
    %cst_11 = arith.constant 0.707106769 : f32
    %11 = vector.broadcast %cst_11 : f32 to vector<32x128xf32>
    %12 = arith.mulf %8, %11 : vector<32x128xf32>
    %13 = math.erf %12 : vector<32x128xf32>
    %cst_12 = arith.constant 1.000000e+00 : f32
    %14 = vector.broadcast %cst_12 : f32 to vector<32x128xf32>
    %15 = arith.addf %14, %13 : vector<32x128xf32>
    %16 = arith.mulf %10, %15 : vector<32x128xf32>
    %cst_13 = arith.constant dense<0.000000e+00> : vector<4x128xf32>
    %17 = tpu.matmul %2, %16, %cst_13 {dimension_numbers = #tpu.dot_dimension_numbers<[1], [0], [0], [1], [0, 0, 1, 1], [], []>} : vector<4x32xf32>, vector<32x128xf32>, vector<4x128xf32> -> vector<4x128xf32>
    %18 = vector.broadcast %3 : vector<4x1xf32> to vector<4x128xf32>
    %19 = arith.addf %17, %18 : vector<4x128xf32>
    %c0_14 = arith.constant 0 : index
    %c0_15 = arith.constant 0 : index
    %c0_16 = arith.constant 0 : index
    %20 = vector.load %arg7[%c0_14, %c0_15, %c0_16] : memref<1x4x128xf32, #tpu.memory_space<vmem>>, vector<1x4x128xf32>
    %21 = vector.shape_cast %20 : vector<1x4x128xf32> to vector<4x128xf32>
    %22 = vector.shape_cast %19 : vector<4x128xf32> to vector<1x4x128xf32>
    tpu.vector_store %arg7[%c0_14, %c0_15, %c0_16], %22 {strides = array<i32>} : memref<1x4x128xf32, #tpu.memory_space<vmem>>, vector<1x4x128xf32>,
    return
  }
  func.func @transform_0(%arg0: i32, %arg1: i32) -> (i32, i32, i32) {
    %c0_i32 = arith.constant 0 : i32
    %c0_i32_0 = arith.constant 0 : i32
    return %arg0, %c0_i32, %arg1 : i32, i32, i32
  }
  func.func @transform_1(%arg0: i32, %arg1: i32) -> (i32, i32) {
    %c0_i32 = arith.constant 0 : i32
    %c0_i32_0 = arith.constant 0 : i32
    %c0_i32_1 = arith.constant 0 : i32
    return %c0_i32, %c0_i32_0 : i32, i32
  }
  func.func @transform_2(%arg0: i32, %arg1: i32) -> (i32, i32) {
    %c0_i32 = arith.constant 0 : i32
    %c0_i32_0 = arith.constant 0 : i32
    %c0_i32_1 = arith.constant 0 : i32
    return %c0_i32, %c0_i32_0 : i32, i32
  }
  func.func @transform_3(%arg0: i32, %arg1: i32) -> (i32, i32) {
    %c0_i32 = arith.constant 0 : i32
    %c0_i32_0 = arith.constant 0 : i32
    %c0_i32_1 = arith.constant 0 : i32
    return %c0_i32, %c0_i32_0 : i32, i32
  }
  func.func @transform_4(%arg0: i32, %arg1: i32) -> (i32, i32) {
    %c0_i32 = arith.constant 0 : i32
    %c0_i32_0 = arith.constant 0 : i32
    %c0_i32_1 = arith.constant 0 : i32
    return %c0_i32, %c0_i32_0 : i32, i32
  }
  func.func @transform_5(%arg0: i32, %arg1: i32) -> (i32, i32, i32) {
    %c0_i32 = arith.constant 0 : i32
    %c0_i32_0 = arith.constant 0 : i32
    return %arg0, %c0_i32, %arg1 : i32, i32, i32
  }
}

module attributes {stable_mosaic.version = 11 : i64} {
  func.func @conv_mlp_kernel(%arg0: i32, %arg1: i32, %arg2: memref<1x4x128xf32, #tpu.memory_space<vmem>>, %arg3: memref<32x4xf32, #tpu.memory_space<vmem>>, %arg4: memref<32x1xf32, #tpu.memory_space<vmem>>, %arg5: memref<4x32xf32, #tpu.memory_space<vmem>>, %arg6: memref<4x1xf32, #tpu.memory_space<vmem>>, %arg7: memref<1x4x128xf32, #tpu.memory_space<vmem>>) attributes {dimension_semantics = [#tpu.dimension_semantics<parallel>, #tpu.dimension_semantics<parallel>], iteration_bounds = array<i64: 2, 2>, scalar_prefetch = 0 : i64, scratch_operands = 0 : i64, tpu.core_type = #tpu.core_type<tc>, window_params = [{transform_indices = @transform_0, window_bounds = array<i64: 1, 4, 128>}, {pipeline_mode = #tpu.pipeline_mode<synchronous>, transform_indices = @transform_1, window_bounds = array<i64: 32, 4>}, {pipeline_mode = #tpu.pipeline_mode<synchronous>, transform_indices = @transform_2, window_bounds = array<i64: 32, 1>}, {pipeline_mode = #tpu.pipeline_mode<synchronous>, transform_indices = @transform_3, window_bounds = array<i64: 4, 32>}, {pipeline_mode = #tpu.pipeline_mode<synchronous>, transform_indices = @transform_4, window_bounds = array<i64: 4, 1>}, {transform_indices = @transform_5, window_bounds = array<i64: 1, 4, 128>}]} {
    %c0 = arith.constant 0 : index
    %c0_0 = arith.constant 0 : index
    %0 = vector.load %arg3[%c0, %c0_0] : memref<32x4xf32, #tpu.memory_space<vmem>>, vector<32x4xf32>
    %c0_1 = arith.constant 0 : index
    %c0_2 = arith.constant 0 : index
    %1 = vector.load %arg4[%c0_1, %c0_2] : memref<32x1xf32, #tpu.memory_space<vmem>>, vector<32x1xf32>
    %c0_3 = arith.constant 0 : index
    %c0_4 = arith.constant 0 : index
    %2 = vector.load %arg5[%c0_3, %c0_4] : memref<4x32xf32, #tpu.memory_space<vmem>>, vector<4x32xf32>
    %c0_5 = arith.constant 0 : index
    %c0_6 = arith.constant 0 : index
    %3 = vector.load %arg6[%c0_5, %c0_6] : memref<4x1xf32, #tpu.memory_space<vmem>>, vector<4x1xf32>
    %c0_7 = arith.constant 0 : index
    %c0_8 = arith.constant 0 : index
    %c0_9 = arith.constant 0 : index
    %4 = vector.load %arg2[%c0_7, %c0_8, %c0_9] : memref<1x4x128xf32, #tpu.memory_space<vmem>>, vector<1x4x128xf32>
    %5 = vector.shape_cast %4 : vector<1x4x128xf32> to vector<4x128xf32>
    %cst = arith.constant dense<0.000000e+00> : vector<32x128xf32>
    %6 = tpu.matmul %0, %5, %cst {dimension_numbers = #tpu.dot_dimension_numbers<[1], [0], [0], [1], [0, 0, 1, 1], [], []>} : vector<32x4xf32>, vector<4x128xf32>, vector<32x128xf32> -> vector<32x128xf32>
    %7 = vector.broadcast %1 : vector<32x1xf32> to vector<32x128xf32>
    %8 = arith.addf %6, %7 : vector<32x128xf32>
    %cst_10 = arith.constant 5.000000e-01 : f32
    %9 = vector.broadcast %cst_10 : f32 to vector<32x128xf32>
    %10 = arith.mulf %9, %8 : vector<32x128xf32>
    %cst_11 = arith.constant 0.707106769 : f32
    %11 = vector.broadcast %cst_11 : f32 to vector<32x128xf32>
    %12 = arith.mulf %8, %11 : vector<32x128xf32>
    %13 = math.erf %12 : vector<32x128xf32>
    %cst_12 = arith.constant 1.000000e+00 : f32
    %14 = vector.broadcast %cst_12 : f32 to vector<32x128xf32>
    %15 = arith.addf %14, %13 : vector<32x128xf32>
    %16 = arith.mulf %10, %15 : vector<32x128xf32>
    %cst_13 = arith.constant dense<0.000000e+00> : vector<4x128xf32>
    %17 = tpu.matmul %2, %16, %cst_13 {dimension_numbers = #tpu.dot_dimension_numbers<[1], [0], [0], [1], [0, 0, 1, 1], [], []>} : vector<4x32xf32>, vector<32x128xf32>, vector<4x128xf32> -> vector<4x128xf32>
    %18 = vector.broadcast %3 : vector<4x1xf32> to vector<4x128xf32>
    %19 = arith.addf %17, %18 : vector<4x128xf32>
    %c0_14 = arith.constant 0 : index
    %c0_15 = arith.constant 0 : index
    %c0_16 = arith.constant 0 : index
    %20 = vector.load %arg7[%c0_14, %c0_15, %c0_16] : memref<1x4x128xf32, #tpu.memory_space<vmem>>, vector<1x4x128xf32>
    %21 = vector.shape_cast %20 : vector<1x4x128xf32> to vector<4x128xf32>
    %22 = vector.shape_cast %19 : vector<4x128xf32> to vector<1x4x128xf32>
    tpu.vector_store %arg7[%c0_14, %c0_15, %c0_16], %22 {strides = array<i32>} : memref<1x4x128xf32, #tpu.memory_space<vmem>>, vector<1x4x128xf32>,
    return
  }
  func.func @transform_0(%arg0: i32, %arg1: i32) -> (i32, i32, i32) {
    %c0_i32 = arith.constant 0 : i32
    %c0_i32_0 = arith.constant 0 : i32
    return %arg0, %c0_i32, %arg1 : i32, i32, i32
  }
  func.func @transform_1(%arg0: i32, %arg1: i32) -> (i32, i32) {
    %c0_i32 = arith.constant 0 : i32
    %c0_i32_0 = arith.constant 0 : i32
    %c0_i32_1 = arith.constant 0 : i32
    return %c0_i32, %c0_i32_0 : i32, i32
  }
  func.func @transform_2(%arg0: i32, %arg1: i32) -> (i32, i32) {
    %c0_i32 = arith.constant 0 : i32
    %c0_i32_0 = arith.constant 0 : i32
    %c0_i32_1 = arith.constant 0 : i32
    return %c0_i32, %c0_i32_0 : i32, i32
  }
  func.func @transform_3(%arg0: i32, %arg1: i32) -> (i32, i32) {
    %c0_i32 = arith.constant 0 : i32
    %c0_i32_0 = arith.constant 0 : i32
    %c0_i32_1 = arith.constant 0 : i32
    return %c0_i32, %c0_i32_0 : i32, i32
  }
  func.func @transform_4(%arg0: i32, %arg1: i32) -> (i32, i32) {
    %c0_i32 = arith.constant 0 : i32
    %c0_i32_0 = arith.constant 0 : i32
    %c0_i32_1 = arith.constant 0 : i32
    return %c0_i32, %c0_i32_0 : i32, i32
  }
  func.func @transform_5(%arg0: i32, %arg1: i32) -> (i32, i32, i32) {
    %c0_i32 = arith.constant 0 : i32
    %c0_i32_0 = arith.constant 0 : i32
    return %arg0, %c0_i32, %arg1 : i32, i32, i32
  }
}

</mosaic_0001>

<llo_original>
// kernel: tpu_custom_call.1
$region0: #{tpu_custom_call.1}
  #allocation0 [shape = 'u32[]', space=smem, size = 0x4, offset = 0x4, fixed_abs, tag = 'smem constant byte address 0x4 - core index']
  #allocation1 [shape = 'u32[144,128]{1,0:T(1,128)}', space=vmem, size = 0x12000, scoped, tag = 'internal scratch']
  %s0 = inlined_call_operand.vmem [shape: f32[2,4,256], index: 0, kind: input, shape index: {}]
  %s1 = inlined_call_operand.vmem [shape: f32[32,4], index: 1, kind: input, shape index: {}]
  %s2 = inlined_call_operand.vmem [shape: f32[32,1], index: 2, kind: input, shape index: {}]
  %s3 = inlined_call_operand.vmem [shape: f32[4,32], index: 3, kind: input, shape index: {}]
  %s4 = inlined_call_operand.vmem [shape: f32[4,1], index: 4, kind: input, shape index: {}]
  %s5 = inlined_call_operand.hbm [shape: f32[2,4,256], index: 5, kind: output, shape index: {}]
  %s6 = sld [smem:[#allocation0]]
  $region53: #{tpu_custom_call.1} parent=0
    _
  %s8 = ssub.s32 1, %s6
  %s9 = scalar_select 0, %s8, %s6
  $region1: #{tpu_custom_call.1} parent=0
    #allocation2 [shape = 'u8[4096]{0}', space=vmem, size = 0x1000, scoped, tag = 'output window, operand 0']
    #allocation3 [shape = 's32[2]{0}', space=sflag, size = 0x8, scoped, tag = 'scoped memory for tpu_custom_call.1']
    %10 = vsyncpa [#allocation3], 0
    %s11 = scalar_lea.sflag [#allocation3], 1
    %12 = vsyncpa %s11, 0
    loop: start=0, step=1, limit=6
    $region2: #{tpu_custom_call.1} parent=1 // loop_pre_header
      _
    $region3: #{tpu_custom_call.1} parent=1 // loop_header
      %s14 = sphi 0, %s18
      %p15 = scmp.ge.s32.totalorder %s14, 6
      %s21 = sphi 0, %s33
      %s22 = sphi 0, %s29
      %s23 = sphi 0, %s21
      %s24 = sphi 0, %s22
      %s25 = sphi 0, %s23
      %s26 = sphi 0, %s24
      %s38 = sphi 0, %s40
      %s41 = sphi 0, %s38
      %s42 = sphi 0, %s41
      %s58 = sphi 0, %s42
      %s62 = sphi 0, %s62
      %s64 = sphi 0, %s62
      %s65 = sphi 0, %s64
      %s79 = sphi 0, %s65
      %s83 = sphi 0, %s83
      %s85 = sphi 0, %s83
      %s86 = sphi 0, %s85
      %s100 = sphi 0, %s86
      %s104 = sphi 0, %s104
      %s106 = sphi 0, %s104
      %s107 = sphi 0, %s106
      %s121 = sphi 0, %s107
      %s125 = sphi 0, %s125
      %s127 = sphi 0, %s125
      %s128 = sphi 0, %s127
      %s142 = sphi 0, %s128
      %s150 = sphi 0, %s152
      %s153 = sphi 0, %s150
      %s154 = sphi 0, %s153
      %s170 = sphi 0, %s154
    $region4: #{tpu_custom_call.1} parent=1 // loop_header_branch
      %17 = sbr.rel (%p15) target = $region8
    $region5: #{tpu_custom_call.1} parent=1 // loop_body
      %s19 = ssub.s32 %s14, 1
      %s20 = ssub.s32 %s14, 2
      %s27 = sadd.s32 1, %s22
      %p28 = scmp.ge.s32.totalorder %s27, 2
      %s29 = scalar_select %p28, 0, %s27
      %s30 = sadd.s32 1, %s21
      %s31 = scalar_select %p28, %s30, %s21
      %p32 = scmp.ge.s32.totalorder %s31, 2
      %s33 = scalar_select %p32, 0, %s31
      %s34 = ssub.s32 %s21, %s33
      %s35 = ssub.s32 %s22, %s29
      %s36 = sor.u32 %s34, %s35
      %p37 = scmp.eq.s32.totalorder %s36, 0
      %s39 = sadd.s32 %s38, 1
      %s40 = scalar_select %p37, %s38, %s39
      %p43 = pneg %p37
      %p44 = scmp.eq.s32.totalorder %s14, 3
      %p45 = por %p43, %p44
      %p46 = scmp.ne.s32.totalorder %s38, %s41
      %p47 = scmp.eq.s32.totalorder %s14, 0
      %p48 = por %p46, %p47
      %p49 = scmp.ne.s32.totalorder %s38, %s41
      %p50 = scmp.eq.s32.totalorder %s19, 3
      %p51 = por %p49, %p50
      %p52 = scmp.ne.s32.totalorder %s41, %s42
      %p53 = scmp.eq.s32.totalorder %s19, 0
      %p54 = por %p52, %p53
      %p55 = scmp.ne.s32.totalorder %s41, %s42
      %p56 = scmp.eq.s32.totalorder %s20, 3
      %p57 = por %p55, %p56
      %p59 = scmp.ne.s32.totalorder %s42, %s58
      %p60 = scmp.eq.s32.totalorder %s20, 0
      %p61 = por %p59, %p60
      %s63 = sadd.s32 %s62, 1
      %p66 = scmp.eq.s32.totalorder %s14, 3
      %p67 = scmp.ne.s32.totalorder %s62, %s64
      %p68 = scmp.eq.s32.totalorder %s14, 0
      %p69 = por %p67, %p68
      %p70 = scmp.ne.s32.totalorder %s62, %s64
      %p71 = scmp.eq.s32.totalorder %s19, 3
      %p72 = por %p70, %p71
      %p73 = scmp.ne.s32.totalorder %s64, %s65
      %p74 = scmp.eq.s32.totalorder %s19, 0
      %p75 = por %p73, %p74
      %p76 = scmp.ne.s32.totalorder %s64, %s65
      %p77 = scmp.eq.s32.totalorder %s20, 3
      %p78 = por %p76, %p77
      %p80 = scmp.ne.s32.totalorder %s65, %s79
      %p81 = scmp.eq.s32.totalorder %s20, 0
      %p82 = por %p80, %p81
      %s84 = sadd.s32 %s83, 1
      %p87 = scmp.eq.s32.totalorder %s14, 3
      %p88 = scmp.ne.s32.totalorder %s83, %s85
      %p89 = scmp.eq.s32.totalorder %s14, 0
      %p90 = por %p88, %p89
      %p91 = scmp.ne.s32.totalorder %s83, %s85
      %p92 = scmp.eq.s32.totalorder %s19, 3
      %p93 = por %p91, %p92
      %p94 = scmp.ne.s32.totalorder %s85, %s86
      %p95 = scmp.eq.s32.totalorder %s19, 0
      %p96 = por %p94, %p95
      %p97 = scmp.ne.s32.totalorder %s85, %s86
      %p98 = scmp.eq.s32.totalorder %s20, 3
      %p99 = por %p97, %p98
      %p101 = scmp.ne.s32.totalorder %s86, %s100
      %p102 = scmp.eq.s32.totalorder %s20, 0
      %p103 = por %p101, %p102
      %s105 = sadd.s32 %s104, 1
      %p108 = scmp.eq.s32.totalorder %s14, 3
      %p109 = scmp.ne.s32.totalorder %s104, %s106
      %p110 = scmp.eq.s32.totalorder %s14, 0
      %p111 = por %p109, %p110
      %p112 = scmp.ne.s32.totalorder %s104, %s106
      %p113 = scmp.eq.s32.totalorder %s19, 3
      %p114 = por %p112, %p113
      %p115 = scmp.ne.s32.totalorder %s106, %s107
      %p116 = scmp.eq.s32.totalorder %s19, 0
      %p117 = por %p115, %p116
      %p118 = scmp.ne.s32.totalorder %s106, %s107
      %p119 = scmp.eq.s32.totalorder %s20, 3
      %p120 = por %p118, %p119
      %p122 = scmp.ne.s32.totalorder %s107, %s121
      %p123 = scmp.eq.s32.totalorder %s20, 0
      %p124 = por %p122, %p123
      %s126 = sadd.s32 %s125, 1
      %p129 = scmp.eq.s32.totalorder %s14, 3
      %p130 = scmp.ne.s32.totalorder %s125, %s127
      %p131 = scmp.eq.s32.totalorder %s14, 0
      %p132 = por %p130, %p131
      %p133 = scmp.ne.s32.totalorder %s125, %s127
      %p134 = scmp.eq.s32.totalorder %s19, 3
      %p135 = por %p133, %p134
      %p136 = scmp.ne.s32.totalorder %s127, %s128
      %p137 = scmp.eq.s32.totalorder %s19, 0
      %p138 = por %p136, %p137
      %p139 = scmp.ne.s32.totalorder %s127, %s128
      %p140 = scmp.eq.s32.totalorder %s20, 3
      %p141 = por %p139, %p140
      %p143 = scmp.ne.s32.totalorder %s128, %s142
      %p144 = scmp.eq.s32.totalorder %s20, 0
      %p145 = por %p143, %p144
      %s146 = ssub.s32 %s21, %s33
      %s147 = ssub.s32 %s22, %s29
      %s148 = sor.u32 %s146, %s147
      %p149 = scmp.eq.s32.totalorder %s148, 0
      %s151 = sadd.s32 %s150, 1
      %s152 = scalar_select %p149, %s150, %s151
      %p155 = pneg %p149
      %p156 = scmp.eq.s32.totalorder %s14, 3
      %p157 = por %p155, %p156
      %p158 = scmp.ne.s32.totalorder %s150, %s153
      %p159 = scmp.eq.s32.totalorder %s14, 0
      %p160 = por %p158, %p159
      %p161 = scmp.ne.s32.totalorder %s150, %s153
      %p162 = scmp.eq.s32.totalorder %s19, 3
      %p163 = por %p161, %p162
      %p164 = scmp.ne.s32.totalorder %s153, %s154
      %p165 = scmp.eq.s32.totalorder %s19, 0
      %p166 = por %p164, %p165
      %p167 = scmp.ne.s32.totalorder %s153, %s154
      %p168 = scmp.eq.s32.totalorder %s20, 3
      %p169 = por %p167, %p168
      %p171 = scmp.ne.s32.totalorder %s154, %s170
      %p172 = scmp.eq.s32.totalorder %s20, 0
      %p173 = por %p171, %p172
      %p174 = scmp.le.s32.totalorder 1, %s14
      %p175 = scmp.lt.s32.totalorder %s14, 5
      %p176 = pnand %p174, %p175
      %p177 = pneg %p176
      // Predicated region
      $region9: #{tpu_custom_call.1} parent=5 // pred_check
        _
      $region10: #{tpu_custom_call.1} parent=5 // pred_check_branch
        %179 = sbr.rel (%p176) target = $region12
      $region11: #{tpu_custom_call.1} parent=5 // pred_region
        %s180 = ssub.s32 %s14, 1
        // Predicated region
        $region13: #{tpu_custom_call.1} parent=11 // pred_check
          %p181 = pneg %p75
        $region14: #{tpu_custom_call.1} parent=11 // pred_check_branch
          %183 = sbr.rel (%p181) target = $region16
        $region15: #{tpu_custom_call.1} parent=11 // pred_region
          _
        $region16: #{tpu_custom_call.1} parent=11 // pred_fallthru
          _
        // Predicated region
        $region17: #{tpu_custom_call.1} parent=11 // pred_check
          %p184 = pneg %p96
        $region18: #{tpu_custom_call.1} parent=11 // pred_check_branch
          %186 = sbr.rel (%p184) target = $region20
        $region19: #{tpu_custom_call.1} parent=11 // pred_region
          _
        $region20: #{tpu_custom_call.1} parent=11 // pred_fallthru
          _
        // Predicated region
        $region21: #{tpu_custom_call.1} parent=11 // pred_check
          %p187 = pneg %p117
        $region22: #{tpu_custom_call.1} parent=11 // pred_check_branch
          %189 = sbr.rel (%p187) target = $region24
        $region23: #{tpu_custom_call.1} parent=11 // pred_region
          _
        $region24: #{tpu_custom_call.1} parent=11 // pred_fallthru
          _
        // Predicated region
        $region25: #{tpu_custom_call.1} parent=11 // pred_check
          %p190 = pneg %p138
        $region26: #{tpu_custom_call.1} parent=11 // pred_check_branch
          %192 = sbr.rel (%p190) target = $region28
        $region27: #{tpu_custom_call.1} parent=11 // pred_region
          _
        $region28: #{tpu_custom_call.1} parent=11 // pred_fallthru
          _
      $region12: #{tpu_custom_call.1} parent=5 // pred_fallthru
        _
      %p193 = scmp.lt.s32.totalorder %s14, 4
      // Predicated region
      $region29: #{tpu_custom_call.1} parent=5 // pred_check
        %p194 = pneg %p193
      $region30: #{tpu_custom_call.1} parent=5 // pred_check_branch
        %196 = sbr.rel (%p194) target = $region32
      $region31: #{tpu_custom_call.1} parent=5 // pred_region
        // Predicated region
        $region33: #{tpu_custom_call.1} parent=31 // pred_check
          %p197 = pneg %p48
        $region34: #{tpu_custom_call.1} parent=31 // pred_check_branch
          %199 = sbr.rel (%p197) target = $region36
        $region35: #{tpu_custom_call.1} parent=31 // pred_region
          %p200 = scmp.lt.s32.totalorder %s21, 1
          %s201 = scalar_select %p200, %s21, 1
          %p202 = scmp.lt.s32.totalorder %s22, 1
          %s203 = scalar_select %p202, %s22, 1
          %s204 = smul.addr %s201, 2
          %s205 = sadd.s32 %s203, %s204
          %s206 = smul.addr %s205, 4
          %s207 = scalar_lea.vmem %s0, %s206
        $region36: #{tpu_custom_call.1} parent=31 // pred_fallthru
          _
      $region32: #{tpu_custom_call.1} parent=5 // pred_fallthru
        _
      %p208 = scmp.le.s32.totalorder 1, %s14
      %p209 = scmp.lt.s32.totalorder %s14, 5
      %p210 = pnand %p208, %p209
      %p211 = pneg %p210
      // Predicated region
      $region37: #{tpu_custom_call.1} parent=5 // pred_check
        _
      $region38: #{tpu_custom_call.1} parent=5 // pred_check_branch
        %213 = sbr.rel (%p210) target = $region40
      $region39: #{tpu_custom_call.1} parent=5 // pred_region
        %s214 = ssub.s32 %s14, 1
        %p215 = scmp.lt.s32.totalorder %s23, 1
        %s216 = scalar_select %p215, %s23, 1
        %p217 = scmp.lt.s32.totalorder %s24, 1
        %s218 = scalar_select %p217, %s24, 1
        %s219 = smul.addr %s216, 2
        %s220 = sadd.s32 %s218, %s219
        %s221 = smul.addr %s220, 4
        %s222 = scalar_lea.vmem %s0, %s221
        %p223 = pneg %p54
        %p224 = pneg %p51
        %p225 = pneg %p75
        %p226 = pneg %p72
        %p227 = pneg %p96
        %p228 = pneg %p93
        %p229 = pneg %p117
        %p230 = pneg %p114
        %p231 = pneg %p138
        %p232 = pneg %p135
        %p233 = pneg %p166
        %p234 = pneg %p163
        %s235 = sand.u32 %s153, 1
        %s236 = scalar_lea.sflag [#allocation3], %s235
        %s237 = sand.u32 %s153, 1
        %s238 = smul.addr %s237, 4
        %s239 = scalar_lea.vmem [#allocation2], %s238
        %p240 = scmp.lt.s32.totalorder %s23, 1
        %s241 = scalar_select %p240, %s23, 1
        %p242 = scmp.lt.s32.totalorder %s24, 1
        %s243 = scalar_select %p242, %s24, 1
        %s244 = smul.addr %s241, 2
        %s245 = sadd.s32 %s243, %s244
        %s246 = smul.addr %s245, 4
        %s247 = scalar_lea.vmem %s0, %s246
        %v248 = vld [vmem:[%s1] sm:$0xff]
        %v249 = vld [vmem:[%s1 + $0x8] sm:$0xff]
        %v250 = vld [vmem:[%s1 + $0x10] sm:$0xff]
        %v251 = vld [vmem:[%s1 + $0x18] sm:$0xff]
        %v252 = vld [vmem:[%s2] sm:$0xff]
        %v253 = vld [vmem:[%s2 + $0x8] sm:$0xff]
        %v254 = vld [vmem:[%s2 + $0x10] sm:$0xff]
        %v255 = vld [vmem:[%s2 + $0x18] sm:$0xff]
        %v256 = vld [vmem:[%s3] sm:$0xf]
        %v257 = vld [vmem:[%s4] sm:$0xf]
        %v258 = vld [vmem:[%s247] sm:$0xf]
        %260 = vset.pattern.permute.xlu0 0
        %261 = vperm.xlu0 %260, %v252
        %v262 = vpop.permute.xlu0 %261
        %265 = vset.pattern.permute.xlu0 0
        %266 = vperm.xlu0 %265, %v253
        %v267 = vpop.permute.xlu0 %266
        %270 = vset.pattern.permute.xlu0 0
        %271 = vperm.xlu0 %270, %v254
        %v272 = vpop.permute.xlu0 %271
        %275 = vset.pattern.permute.xlu0 0
        %276 = vperm.xlu0 %275, %v255
        %v277 = vpop.permute.xlu0 %276
        %vm279 = vcmask 31744
        %v281 = vsel %vm279, %v248, 0
        %v284 = vsel %vm279, %v249, 0
        %v287 = vsel %vm279, %v250, 0
        %v290 = vsel %vm279, %v251, 0
        %vm292 = vcmask 1043456
        %v294 = vsel %vm292, %v258, 0
        %296 = vmatprep.subr.mxu0 0.0
        %297 = vmatpush1.msra.mxu0 0.0
        %298 = vmatprep.subr.mxu0 0.0
        %299 = vmatpush1.msra.mxu0 0.0
        %300 = vmatprep.subr.mxu0 0.0
        %301 = vmatpush1.msra.mxu0 0.0
        %302 = vmatprep.subr.mxu0 0.0
        %303 = vmatpush1.msra.mxu0 0.0
        %304 = vmatprep.subr.mxu0 0.0
        %305 = vmatpush1.msra.mxu0 0.0
        %306 = vmatprep.subr.mxu0 0.0
        %307 = vmatpush1.msra.mxu0 0.0
        %308 = vmatprep.subr.mxu0 0.0
        %309 = vmatpush1.msra.mxu0 0.0
        %310 = vmatprep.subr.mxu0 0.0
        %311 = vmatpush1.msra.mxu0 0.0
        %312 = vmatprep.subr.mxu0 0.0
        %313 = vmatpush1.msra.mxu0 0.0
        %314 = vmatprep.subr.mxu0 0.0
        %315 = vmatpush1.msra.mxu0 0.0
        %316 = vmatprep.subr.mxu0 0.0
        %317 = vmatpush1.msra.mxu0 0.0
        %318 = vmatprep.subr.mxu0 0.0
        %319 = vmatpush1.msra.mxu0 0.0
        %320 = vmatprep.subr.mxu0 0.0
        %321 = vmatpush1.msra.mxu0 0.0
        %322 = vmatprep.subr.mxu0 0.0
        %323 = vmatpush1.msra.mxu0 0.0
        %324 = vmatprep.subr.mxu0 0.0
        %325 = vmatpush1.msra.mxu0 0.0
        %326 = vmatprep.subr.mxu0 0.0
        %327 = vmatpush1.msra.mxu0 %v294
        %328 = vmatprep.subr.mxu0 0.0
        %329 = vmatpush2.msra.mxu0 0.0
        %330 = vmatprep.subr.mxu0 0.0
        %331 = vmatpush2.msra.mxu0 0.0
        %332 = vmatprep.subr.mxu0 0.0
        %333 = vmatpush2.msra.mxu0 0.0
        %334 = vmatprep.subr.mxu0 0.0
        %335 = vmatpush2.msra.mxu0 0.0
        %336 = vmatprep.subr.mxu0 0.0
        %337 = vmatpush2.msra.mxu0 0.0
        %338 = vmatprep.subr.mxu0 0.0
        %339 = vmatpush2.msra.mxu0 0.0
        %340 = vmatprep.subr.mxu0 0.0
        %341 = vmatpush2.msra.mxu0 0.0
        %342 = vmatprep.subr.mxu0 0.0
        %343 = vmatpush2.msra.mxu0 0.0
        %344 = vmatprep.subr.mxu0 0.0
        %345 = vmatpush2.msra.mxu0 0.0
        %346 = vmatprep.subr.mxu0 0.0
        %347 = vmatpush2.msra.mxu0 0.0
        %348 = vmatprep.subr.mxu0 0.0
        %349 = vmatpush2.msra.mxu0 0.0
        %350 = vmatprep.subr.mxu0 0.0
        %351 = vmatpush2.msra.mxu0 0.0
        %352 = vmatprep.subr.mxu0 0.0
        %353 = vmatpush2.msra.mxu0 0.0
        %354 = vmatprep.subr.mxu0 0.0
        %355 = vmatpush2.msra.mxu0 0.0
        %356 = vmatprep.subr.mxu0 0.0
        %357 = vmatpush2.msra.mxu0 0.0
        %358 = vmatprep.subr.mxu0 0.0
        %359 = vmatpush2.msra.mxu0 0.0
        %360 = vmatprep.mubr.f32.mxu0 0.0
        %361 = vmatmul.mubr.f32.gmra.mxu0 %v281
        %v362 = vpop.f32.mrf.mxu0
        %v363 = vadd.f32 %v262, %v362
        %v364 = vpop.f32.mrf.mxu0
        %365 = vmatprep.mubr.f32.mxu0 0.0
        %366 = vmatmul.mubr.f32.gmra.mxu0 %v284
        %v367 = vpop.f32.mrf.mxu0
        %v368 = vadd.f32 %v267, %v367
        %v369 = vpop.f32.mrf.mxu0
        %370 = vmatprep.mubr.f32.mxu0 0.0
        %371 = vmatmul.mubr.f32.gmra.mxu0 %v287
        %v372 = vpop.f32.mrf.mxu0
        %v373 = vadd.f32 %v272, %v372
        %v374 = vpop.f32.mrf.mxu0
        %375 = vmatprep.mubr.f32.mxu0 0.0
        %376 = vmatmul.mubr.f32.gmra.mxu0 %v290
        %v377 = vpop.f32.mrf.mxu0
        %v378 = vadd.f32 %v277, %v377
        %v379 = vpop.f32.mrf.mxu0
        %380 = vdwg.mxu0
        %v381 = vmul.f32 %v363, 0.5
        %v382 = vmul.f32 %v368, 0.5
        %v383 = vmul.f32 %v373, 0.5
        %v384 = vmul.f32 %v378, 0.5
        %v385 = vmul.f32 %v363, 0.70710677
        %v386 = vmul.f32 %v368, 0.70710677
        %v387 = vmul.f32 %v373, 0.70710677
        %v388 = vmul.f32 %v378, 0.70710677
        %v389 = verf.f32.pop %v385
        %v390 = verf.f32.pop %v386
        %v391 = verf.f32.pop %v387
        %v392 = verf.f32.pop %v388
        %v393 = vadd.f32 %v389, 1.0
        %v394 = vadd.f32 %v390, 1.0
        %v395 = vadd.f32 %v391, 1.0
        %v396 = vadd.f32 %v392, 1.0
        %v397 = vmul.f32 %v381, %v393
        %v398 = vmul.f32 %v382, %v394
        %v399 = vmul.f32 %v383, %v395
        %v400 = vmul.f32 %v384, %v396
        %402 = vset.pattern.permute.xlu0 0
        %403 = vperm.xlu0 %402, %v257
        %v404 = vpop.permute.xlu0 %403
        %vm406 = vcmask 261120
        %v408 = vsel %vm406, %v256, 0
        %410 = vmatprep.subr.mxu0 0.0
        %411 = vmatpush1.msra.mxu0 0.0
        %412 = vmatprep.subr.mxu0 0.0
        %413 = vmatpush1.msra.mxu0 0.0
        %414 = vmatprep.subr.mxu0 0.0
        %415 = vmatpush1.msra.mxu0 0.0
        %416 = vmatprep.subr.mxu0 0.0
        %417 = vmatpush1.msra.mxu0 0.0
        %418 = vmatprep.subr.mxu0 0.0
        %419 = vmatpush1.msra.mxu0 0.0
        %420 = vmatprep.subr.mxu0 0.0
        %421 = vmatpush1.msra.mxu0 0.0
        %422 = vmatprep.subr.mxu0 0.0
        %423 = vmatpush1.msra.mxu0 0.0
        %424 = vmatprep.subr.mxu0 0.0
        %425 = vmatpush1.msra.mxu0 0.0
        %426 = vmatprep.subr.mxu0 0.0
        %427 = vmatpush1.msra.mxu0 0.0
        %428 = vmatprep.subr.mxu0 0.0
        %429 = vmatpush1.msra.mxu0 0.0
        %430 = vmatprep.subr.mxu0 0.0
        %431 = vmatpush1.msra.mxu0 0.0
        %432 = vmatprep.subr.mxu0 0.0
        %433 = vmatpush1.msra.mxu0 0.0
        %434 = vmatprep.subr.mxu0 0.0
        %435 = vmatpush1.msra.mxu0 %v400
        %436 = vmatprep.subr.mxu0 0.0
        %437 = vmatpush1.msra.mxu0 %v399
        %438 = vmatprep.subr.mxu0 0.0
        %439 = vmatpush1.msra.mxu0 %v398
        %440 = vmatprep.subr.mxu0 0.0
        %441 = vmatpush1.msra.mxu0 %v397
        %442 = vmatprep.subr.mxu0 0.0
        %443 = vmatpush2.msra.mxu0 0.0
        %444 = vmatprep.subr.mxu0 0.0
        %445 = vmatpush2.msra.mxu0 0.0
        %446 = vmatprep.subr.mxu0 0.0
        %447 = vmatpush2.msra.mxu0 0.0
        %448 = vmatprep.subr.mxu0 0.0
        %449 = vmatpush2.msra.mxu0 0.0
        %450 = vmatprep.subr.mxu0 0.0
        %451 = vmatpush2.msra.mxu0 0.0
        %452 = vmatprep.subr.mxu0 0.0
        %453 = vmatpush2.msra.mxu0 0.0
        %454 = vmatprep.subr.mxu0 0.0
        %455 = vmatpush2.msra.mxu0 0.0
        %456 = vmatprep.subr.mxu0 0.0
        %457 = vmatpush2.msra.mxu0 0.0
        %458 = vmatprep.subr.mxu0 0.0
        %459 = vmatpush2.msra.mxu0 0.0
        %460 = vmatprep.subr.mxu0 0.0
        %461 = vmatpush2.msra.mxu0 0.0
        %462 = vmatprep.subr.mxu0 0.0
        %463 = vmatpush2.msra.mxu0 0.0
        %464 = vmatprep.subr.mxu0 0.0
        %465 = vmatpush2.msra.mxu0 0.0
        %466 = vmatprep.subr.mxu0 0.0
        %467 = vmatpush2.msra.mxu0 0.0
        %468 = vmatprep.subr.mxu0 0.0
        %469 = vmatpush2.msra.mxu0 0.0
        %470 = vmatprep.subr.mxu0 0.0
        %471 = vmatpush2.msra.mxu0 0.0
        %472 = vmatprep.subr.mxu0 0.0
        %473 = vmatpush2.msra.mxu0 0.0
        %474 = vmatprep.mubr.f32.mxu0 0.0
        %475 = vmatmul.mubr.f32.gmra.mxu0 %v408
        %v476 = vpop.f32.mrf.mxu0
        %v477 = vadd.f32 %v404, %v476
        %v478 = vpop.f32.mrf.mxu0
        %479 = vdwg.mxu0
        %480 = vst [vmem:[%s239] sm:$0xf] %v477
        %s481 = sand.u32 %s153, 1
        %s482 = scalar_lea.sflag [#allocation3], %s481
        %s483 = sand.u32 %s153, 1
        %s484 = smul.addr %s483, 4
        %s485 = scalar_lea.vmem [#allocation2], %s484
        // Predicated region
        $region41: #{tpu_custom_call.1} parent=39 // pred_check
          %p486 = pneg %p163
        $region42: #{tpu_custom_call.1} parent=39 // pred_check_branch
          %488 = sbr.rel (%p486) target = $region44
        $region43: #{tpu_custom_call.1} parent=39 // pred_region
          %s490 = ssub.s32 64, 64
          %491 = vsyncadd %s482, %s490
          %s492 = smul.addr %s23, 2
          %s493 = sadd.s32 %s24, %s492
          %s494 = smul.addr %s493, 64
          %s495 = scalar_lea.hbm %s5, %s494
          %s497 = sshll.u32 %s485, 4
          %s498 = int_to_ptr.vmem [resolvable:$true] %s497
          %500 = dma.vmem_to_hbm [thread:$0]  %s498, 64, %s495, %s482
        $region44: #{tpu_custom_call.1} parent=39 // pred_fallthru
          _
      $region40: #{tpu_custom_call.1} parent=5 // pred_fallthru
        _
      %p501 = scmp.le.s32.totalorder 2, %s14
      // Predicated region
      $region45: #{tpu_custom_call.1} parent=5 // pred_check
        %p502 = pneg %p501
      $region46: #{tpu_custom_call.1} parent=5 // pred_check_branch
        %504 = sbr.rel (%p502) target = $region48
      $region47: #{tpu_custom_call.1} parent=5 // pred_region
        %s505 = ssub.s32 %s14, 2
        // Predicated region
        $region49: #{tpu_custom_call.1} parent=47 // pred_check
          %p506 = pneg %p169
        $region50: #{tpu_custom_call.1} parent=47 // pred_check_branch
          %508 = sbr.rel (%p506) target = $region52
        $region51: #{tpu_custom_call.1} parent=47 // pred_region
          %s509 = sand.u32 %s154, 1
          %s510 = scalar_lea.sflag [#allocation3], %s509
          %s511 = sand.u32 %s154, 1
          %s512 = smul.addr %s511, 4
          %s513 = scalar_lea.vmem [#allocation2], %s512
          %514 = dma.done %s510, 64
        $region52: #{tpu_custom_call.1} parent=47 // pred_fallthru
          _
      $region48: #{tpu_custom_call.1} parent=5 // pred_fallthru
        _
    $region6: #{tpu_custom_call.1} parent=1 // loop_footer
      %s18 = sadd.s32 1, %s14
    $region7: #{tpu_custom_call.1} parent=1 // loop_footer_branch
      %13 = sbr.rel target = $region3
    $region8: #{tpu_custom_call.1} parent=1 // loop_exit
      _
    %515 = vsyncpa [#allocation3], 1
    %s516 = scalar_lea.sflag [#allocation3], 1
    %517 = vsyncpa %s516, 1

// kernel: tpu_custom_call.1
$region0: #{tpu_custom_call.1}
  #allocation0 [shape = 'u32[]', space=smem, size = 0x4, offset = 0x4, fixed_abs, tag = 'smem constant byte address 0x4 - core index']
  #allocation1 [shape = 'u32[144,128]{1,0:T(1,128)}', space=vmem, size = 0x12000, scoped, tag = 'internal scratch']
  %s0 = inlined_call_operand.vmem [shape: f32[2,4,256], index: 0, kind: input, shape index: {}]
  %s1 = inlined_call_operand.vmem [shape: f32[32,4], index: 1, kind: input, shape index: {}]
  %s2 = inlined_call_operand.vmem [shape: f32[32,1], index: 2, kind: input, shape index: {}]
  %s3 = inlined_call_operand.vmem [shape: f32[4,32], index: 3, kind: input, shape index: {}]
  %s4 = inlined_call_operand.vmem [shape: f32[4,1], index: 4, kind: input, shape index: {}]
  %s5 = inlined_call_operand.hbm [shape: f32[2,4,256], index: 5, kind: output, shape index: {}]
  %s6 = sld [smem:[#allocation0]]
  $region53: #{tpu_custom_call.1} parent=0
    _
  %s8 = ssub.s32 1, %s6
  %s9 = scalar_select 0, %s8, %s6
  $region1: #{tpu_custom_call.1} parent=0
    #allocation2 [shape = 'u8[4096]{0}', space=vmem, size = 0x1000, scoped, tag = 'output window, operand 0']
    #allocation3 [shape = 's32[2]{0}', space=sflag, size = 0x8, scoped, tag = 'scoped memory for tpu_custom_call.1']
    %10 = vsyncpa [#allocation3], 0
    %s11 = scalar_lea.sflag [#allocation3], 1
    %12 = vsyncpa %s11, 0
    loop: start=0, step=1, limit=6
    $region2: #{tpu_custom_call.1} parent=1 // loop_pre_header
      _
    $region3: #{tpu_custom_call.1} parent=1 // loop_header
      %s14 = sphi 0, %s18
      %p15 = scmp.ge.s32.totalorder %s14, 6
      %s21 = sphi 0, %s33
      %s22 = sphi 0, %s29
      %s23 = sphi 0, %s21
      %s24 = sphi 0, %s22
      %s25 = sphi 0, %s23
      %s26 = sphi 0, %s24
      %s38 = sphi 0, %s40
      %s41 = sphi 0, %s38
      %s42 = sphi 0, %s41
      %s58 = sphi 0, %s42
      %s62 = sphi 0, %s62
      %s64 = sphi 0, %s62
      %s65 = sphi 0, %s64
      %s79 = sphi 0, %s65
      %s83 = sphi 0, %s83
      %s85 = sphi 0, %s83
      %s86 = sphi 0, %s85
      %s100 = sphi 0, %s86
      %s104 = sphi 0, %s104
      %s106 = sphi 0, %s104
      %s107 = sphi 0, %s106
      %s121 = sphi 0, %s107
      %s125 = sphi 0, %s125
      %s127 = sphi 0, %s125
      %s128 = sphi 0, %s127
      %s142 = sphi 0, %s128
      %s150 = sphi 0, %s152
      %s153 = sphi 0, %s150
      %s154 = sphi 0, %s153
      %s170 = sphi 0, %s154
    $region4: #{tpu_custom_call.1} parent=1 // loop_header_branch
      %17 = sbr.rel (%p15) target = $region8
    $region5: #{tpu_custom_call.1} parent=1 // loop_body
      %s19 = ssub.s32 %s14, 1
      %s20 = ssub.s32 %s14, 2
      %s27 = sadd.s32 1, %s22
      %p28 = scmp.ge.s32.totalorder %s27, 2
      %s29 = scalar_select %p28, 0, %s27
      %s30 = sadd.s32 1, %s21
      %s31 = scalar_select %p28, %s30, %s21
      %p32 = scmp.ge.s32.totalorder %s31, 2
      %s33 = scalar_select %p32, 0, %s31
      %s34 = ssub.s32 %s21, %s33
      %s35 = ssub.s32 %s22, %s29
      %s36 = sor.u32 %s34, %s35
      %p37 = scmp.eq.s32.totalorder %s36, 0
      %s39 = sadd.s32 %s38, 1
      %s40 = scalar_select %p37, %s38, %s39
      %p43 = pneg %p37
      %p44 = scmp.eq.s32.totalorder %s14, 3
      %p45 = por %p43, %p44
      %p46 = scmp.ne.s32.totalorder %s38, %s41
      %p47 = scmp.eq.s32.totalorder %s14, 0
      %p48 = por %p46, %p47
      %p49 = scmp.ne.s32.totalorder %s38, %s41
      %p50 = scmp.eq.s32.totalorder %s19, 3
      %p51 = por %p49, %p50
      %p52 = scmp.ne.s32.totalorder %s41, %s42
      %p53 = scmp.eq.s32.totalorder %s19, 0
      %p54 = por %p52, %p53
      %p55 = scmp.ne.s32.totalorder %s41, %s42
      %p56 = scmp.eq.s32.totalorder %s20, 3
      %p57 = por %p55, %p56
      %p59 = scmp.ne.s32.totalorder %s42, %s58
      %p60 = scmp.eq.s32.totalorder %s20, 0
      %p61 = por %p59, %p60
      %s63 = sadd.s32 %s62, 1
      %p66 = scmp.eq.s32.totalorder %s14, 3
      %p67 = scmp.ne.s32.totalorder %s62, %s64
      %p68 = scmp.eq.s32.totalorder %s14, 0
      %p69 = por %p67, %p68
      %p70 = scmp.ne.s32.totalorder %s62, %s64
      %p71 = scmp.eq.s32.totalorder %s19, 3
      %p72 = por %p70, %p71
      %p73 = scmp.ne.s32.totalorder %s64, %s65
      %p74 = scmp.eq.s32.totalorder %s19, 0
      %p75 = por %p73, %p74
      %p76 = scmp.ne.s32.totalorder %s64, %s65
      %p77 = scmp.eq.s32.totalorder %s20, 3
      %p78 = por %p76, %p77
      %p80 = scmp.ne.s32.totalorder %s65, %s79
      %p81 = scmp.eq.s32.totalorder %s20, 0
      %p82 = por %p80, %p81
      %s84 = sadd.s32 %s83, 1
      %p87 = scmp.eq.s32.totalorder %s14, 3
      %p88 = scmp.ne.s32.totalorder %s83, %s85
      %p89 = scmp.eq.s32.totalorder %s14, 0
      %p90 = por %p88, %p89
      %p91 = scmp.ne.s32.totalorder %s83, %s85
      %p92 = scmp.eq.s32.totalorder %s19, 3
      %p93 = por %p91, %p92
      %p94 = scmp.ne.s32.totalorder %s85, %s86
      %p95 = scmp.eq.s32.totalorder %s19, 0
      %p96 = por %p94, %p95
      %p97 = scmp.ne.s32.totalorder %s85, %s86
      %p98 = scmp.eq.s32.totalorder %s20, 3
      %p99 = por %p97, %p98
      %p101 = scmp.ne.s32.totalorder %s86, %s100
      %p102 = scmp.eq.s32.totalorder %s20, 0
      %p103 = por %p101, %p102
      %s105 = sadd.s32 %s104, 1
      %p108 = scmp.eq.s32.totalorder %s14, 3
      %p109 = scmp.ne.s32.totalorder %s104, %s106
      %p110 = scmp.eq.s32.totalorder %s14, 0
      %p111 = por %p109, %p110
      %p112 = scmp.ne.s32.totalorder %s104, %s106
      %p113 = scmp.eq.s32.totalorder %s19, 3
      %p114 = por %p112, %p113
      %p115 = scmp.ne.s32.totalorder %s106, %s107
      %p116 = scmp.eq.s32.totalorder %s19, 0
      %p117 = por %p115, %p116
      %p118 = scmp.ne.s32.totalorder %s106, %s107
      %p119 = scmp.eq.s32.totalorder %s20, 3
      %p120 = por %p118, %p119
      %p122 = scmp.ne.s32.totalorder %s107, %s121
      %p123 = scmp.eq.s32.totalorder %s20, 0
      %p124 = por %p122, %p123
      %s126 = sadd.s32 %s125, 1
      %p129 = scmp.eq.s32.totalorder %s14, 3
      %p130 = scmp.ne.s32.totalorder %s125, %s127
      %p131 = scmp.eq.s32.totalorder %s14, 0
      %p132 = por %p130, %p131
      %p133 = scmp.ne.s32.totalorder %s125, %s127
      %p134 = scmp.eq.s32.totalorder %s19, 3
      %p135 = por %p133, %p134
      %p136 = scmp.ne.s32.totalorder %s127, %s128
      %p137 = scmp.eq.s32.totalorder %s19, 0
      %p138 = por %p136, %p137
      %p139 = scmp.ne.s32.totalorder %s127, %s128
      %p140 = scmp.eq.s32.totalorder %s20, 3
      %p141 = por %p139, %p140
      %p143 = scmp.ne.s32.totalorder %s128, %s142
      %p144 = scmp.eq.s32.totalorder %s20, 0
      %p145 = por %p143, %p144
      %s146 = ssub.s32 %s21, %s33
      %s147 = ssub.s32 %s22, %s29
      %s148 = sor.u32 %s146, %s147
      %p149 = scmp.eq.s32.totalorder %s148, 0
      %s151 = sadd.s32 %s150, 1
      %s152 = scalar_select %p149, %s150, %s151
      %p155 = pneg %p149
      %p156 = scmp.eq.s32.totalorder %s14, 3
      %p157 = por %p155, %p156
      %p158 = scmp.ne.s32.totalorder %s150, %s153
      %p159 = scmp.eq.s32.totalorder %s14, 0
      %p160 = por %p158, %p159
      %p161 = scmp.ne.s32.totalorder %s150, %s153
      %p162 = scmp.eq.s32.totalorder %s19, 3
      %p163 = por %p161, %p162
      %p164 = scmp.ne.s32.totalorder %s153, %s154
      %p165 = scmp.eq.s32.totalorder %s19, 0
      %p166 = por %p164, %p165
      %p167 = scmp.ne.s32.totalorder %s153, %s154
      %p168 = scmp.eq.s32.totalorder %s20, 3
      %p169 = por %p167, %p168
      %p171 = scmp.ne.s32.totalorder %s154, %s170
      %p172 = scmp.eq.s32.totalorder %s20, 0
      %p173 = por %p171, %p172
      %p174 = scmp.le.s32.totalorder 1, %s14
      %p175 = scmp.lt.s32.totalorder %s14, 5
      %p176 = pnand %p174, %p175
      %p177 = pneg %p176
      // Predicated region
      $region9: #{tpu_custom_call.1} parent=5 // pred_check
        _
      $region10: #{tpu_custom_call.1} parent=5 // pred_check_branch
        %179 = sbr.rel (%p176) target = $region12
      $region11: #{tpu_custom_call.1} parent=5 // pred_region
        %s180 = ssub.s32 %s14, 1
        // Predicated region
        $region13: #{tpu_custom_call.1} parent=11 // pred_check
          %p181 = pneg %p75
        $region14: #{tpu_custom_call.1} parent=11 // pred_check_branch
          %183 = sbr.rel (%p181) target = $region16
        $region15: #{tpu_custom_call.1} parent=11 // pred_region
          _
        $region16: #{tpu_custom_call.1} parent=11 // pred_fallthru
          _
        // Predicated region
        $region17: #{tpu_custom_call.1} parent=11 // pred_check
          %p184 = pneg %p96
        $region18: #{tpu_custom_call.1} parent=11 // pred_check_branch
          %186 = sbr.rel (%p184) target = $region20
        $region19: #{tpu_custom_call.1} parent=11 // pred_region
          _
        $region20: #{tpu_custom_call.1} parent=11 // pred_fallthru
          _
        // Predicated region
        $region21: #{tpu_custom_call.1} parent=11 // pred_check
          %p187 = pneg %p117
        $region22: #{tpu_custom_call.1} parent=11 // pred_check_branch
          %189 = sbr.rel (%p187) target = $region24
        $region23: #{tpu_custom_call.1} parent=11 // pred_region
          _
        $region24: #{tpu_custom_call.1} parent=11 // pred_fallthru
          _
        // Predicated region
        $region25: #{tpu_custom_call.1} parent=11 // pred_check
          %p190 = pneg %p138
        $region26: #{tpu_custom_call.1} parent=11 // pred_check_branch
          %192 = sbr.rel (%p190) target = $region28
        $region27: #{tpu_custom_call.1} parent=11 // pred_region
          _
        $region28: #{tpu_custom_call.1} parent=11 // pred_fallthru
          _
      $region12: #{tpu_custom_call.1} parent=5 // pred_fallthru
        _
      %p193 = scmp.lt.s32.totalorder %s14, 4
      // Predicated region
      $region29: #{tpu_custom_call.1} parent=5 // pred_check
        %p194 = pneg %p193
      $region30: #{tpu_custom_call.1} parent=5 // pred_check_branch
        %196 = sbr.rel (%p194) target = $region32
      $region31: #{tpu_custom_call.1} parent=5 // pred_region
        // Predicated region
        $region33: #{tpu_custom_call.1} parent=31 // pred_check
          %p197 = pneg %p48
        $region34: #{tpu_custom_call.1} parent=31 // pred_check_branch
          %199 = sbr.rel (%p197) target = $region36
        $region35: #{tpu_custom_call.1} parent=31 // pred_region
          %p200 = scmp.lt.s32.totalorder %s21, 1
          %s201 = scalar_select %p200, %s21, 1
          %p202 = scmp.lt.s32.totalorder %s22, 1
          %s203 = scalar_select %p202, %s22, 1
          %s204 = smul.addr %s201, 2
          %s205 = sadd.s32 %s203, %s204
          %s206 = smul.addr %s205, 4
          %s207 = scalar_lea.vmem %s0, %s206
        $region36: #{tpu_custom_call.1} parent=31 // pred_fallthru
          _
      $region32: #{tpu_custom_call.1} parent=5 // pred_fallthru
        _
      %p208 = scmp.le.s32.totalorder 1, %s14
      %p209 = scmp.lt.s32.totalorder %s14, 5
      %p210 = pnand %p208, %p209
      %p211 = pneg %p210
      // Predicated region
      $region37: #{tpu_custom_call.1} parent=5 // pred_check
        _
      $region38: #{tpu_custom_call.1} parent=5 // pred_check_branch
        %213 = sbr.rel (%p210) target = $region40
      $region39: #{tpu_custom_call.1} parent=5 // pred_region
        %s214 = ssub.s32 %s14, 1
        %p215 = scmp.lt.s32.totalorder %s23, 1
        %s216 = scalar_select %p215, %s23, 1
        %p217 = scmp.lt.s32.totalorder %s24, 1
        %s218 = scalar_select %p217, %s24, 1
        %s219 = smul.addr %s216, 2
        %s220 = sadd.s32 %s218, %s219
        %s221 = smul.addr %s220, 4
        %s222 = scalar_lea.vmem %s0, %s221
        %p223 = pneg %p54
        %p224 = pneg %p51
        %p225 = pneg %p75
        %p226 = pneg %p72
        %p227 = pneg %p96
        %p228 = pneg %p93
        %p229 = pneg %p117
        %p230 = pneg %p114
        %p231 = pneg %p138
        %p232 = pneg %p135
        %p233 = pneg %p166
        %p234 = pneg %p163
        %s235 = sand.u32 %s153, 1
        %s236 = scalar_lea.sflag [#allocation3], %s235
        %s237 = sand.u32 %s153, 1
        %s238 = smul.addr %s237, 4
        %s239 = scalar_lea.vmem [#allocation2], %s238
        %p240 = scmp.lt.s32.totalorder %s23, 1
        %s241 = scalar_select %p240, %s23, 1
        %p242 = scmp.lt.s32.totalorder %s24, 1
        %s243 = scalar_select %p242, %s24, 1
        %s244 = smul.addr %s241, 2
        %s245 = sadd.s32 %s243, %s244
        %s246 = smul.addr %s245, 4
        %s247 = scalar_lea.vmem %s0, %s246
        %v248 = vld [vmem:[%s1] sm:$0xff]
        %v249 = vld [vmem:[%s1 + $0x8] sm:$0xff]
        %v250 = vld [vmem:[%s1 + $0x10] sm:$0xff]
        %v251 = vld [vmem:[%s1 + $0x18] sm:$0xff]
        %v252 = vld [vmem:[%s2] sm:$0xff]
        %v253 = vld [vmem:[%s2 + $0x8] sm:$0xff]
        %v254 = vld [vmem:[%s2 + $0x10] sm:$0xff]
        %v255 = vld [vmem:[%s2 + $0x18] sm:$0xff]
        %v256 = vld [vmem:[%s3] sm:$0xf]
        %v257 = vld [vmem:[%s4] sm:$0xf]
        %v258 = vld [vmem:[%s247] sm:$0xf]
        %260 = vset.pattern.permute.xlu0 0
        %261 = vperm.xlu0 %260, %v252
        %v262 = vpop.permute.xlu0 %261
        %265 = vset.pattern.permute.xlu0 0
        %266 = vperm.xlu0 %265, %v253
        %v267 = vpop.permute.xlu0 %266
        %270 = vset.pattern.permute.xlu0 0
        %271 = vperm.xlu0 %270, %v254
        %v272 = vpop.permute.xlu0 %271
        %275 = vset.pattern.permute.xlu0 0
        %276 = vperm.xlu0 %275, %v255
        %v277 = vpop.permute.xlu0 %276
        %vm279 = vcmask 31744
        %v281 = vsel %vm279, %v248, 0
        %v284 = vsel %vm279, %v249, 0
        %v287 = vsel %vm279, %v250, 0
        %v290 = vsel %vm279, %v251, 0
        %vm292 = vcmask 1043456
        %v294 = vsel %vm292, %v258, 0
        %296 = vmatprep.subr.mxu0 0.0
        %297 = vmatpush1.msra.mxu0 0.0
        %298 = vmatprep.subr.mxu0 0.0
        %299 = vmatpush1.msra.mxu0 0.0
        %300 = vmatprep.subr.mxu0 0.0
        %301 = vmatpush1.msra.mxu0 0.0
        %302 = vmatprep.subr.mxu0 0.0
        %303 = vmatpush1.msra.mxu0 0.0
        %304 = vmatprep.subr.mxu0 0.0
        %305 = vmatpush1.msra.mxu0 0.0
        %306 = vmatprep.subr.mxu0 0.0
        %307 = vmatpush1.msra.mxu0 0.0
        %308 = vmatprep.subr.mxu0 0.0
        %309 = vmatpush1.msra.mxu0 0.0
        %310 = vmatprep.subr.mxu0 0.0
        %311 = vmatpush1.msra.mxu0 0.0
        %312 = vmatprep.subr.mxu0 0.0
        %313 = vmatpush1.msra.mxu0 0.0
        %314 = vmatprep.subr.mxu0 0.0
        %315 = vmatpush1.msra.mxu0 0.0
        %316 = vmatprep.subr.mxu0 0.0
        %317 = vmatpush1.msra.mxu0 0.0
        %318 = vmatprep.subr.mxu0 0.0
        %319 = vmatpush1.msra.mxu0 0.0
        %320 = vmatprep.subr.mxu0 0.0
        %321 = vmatpush1.msra.mxu0 0.0
        %322 = vmatprep.subr.mxu0 0.0
        %323 = vmatpush1.msra.mxu0 0.0
        %324 = vmatprep.subr.mxu0 0.0
        %325 = vmatpush1.msra.mxu0 0.0
        %326 = vmatprep.subr.mxu0 0.0
        %327 = vmatpush1.msra.mxu0 %v294
        %328 = vmatprep.subr.mxu0 0.0
        %329 = vmatpush2.msra.mxu0 0.0
        %330 = vmatprep.subr.mxu0 0.0
        %331 = vmatpush2.msra.mxu0 0.0
        %332 = vmatprep.subr.mxu0 0.0
        %333 = vmatpush2.msra.mxu0 0.0
        %334 = vmatprep.subr.mxu0 0.0
        %335 = vmatpush2.msra.mxu0 0.0
        %336 = vmatprep.subr.mxu0 0.0
        %337 = vmatpush2.msra.mxu0 0.0
        %338 = vmatprep.subr.mxu0 0.0
        %339 = vmatpush2.msra.mxu0 0.0
        %340 = vmatprep.subr.mxu0 0.0
        %341 = vmatpush2.msra.mxu0 0.0
        %342 = vmatprep.subr.mxu0 0.0
        %343 = vmatpush2.msra.mxu0 0.0
        %344 = vmatprep.subr.mxu0 0.0
        %345 = vmatpush2.msra.mxu0 0.0
        %346 = vmatprep.subr.mxu0 0.0
        %347 = vmatpush2.msra.mxu0 0.0
        %348 = vmatprep.subr.mxu0 0.0
        %349 = vmatpush2.msra.mxu0 0.0
        %350 = vmatprep.subr.mxu0 0.0
        %351 = vmatpush2.msra.mxu0 0.0
        %352 = vmatprep.subr.mxu0 0.0
        %353 = vmatpush2.msra.mxu0 0.0
        %354 = vmatprep.subr.mxu0 0.0
        %355 = vmatpush2.msra.mxu0 0.0
        %356 = vmatprep.subr.mxu0 0.0
        %357 = vmatpush2.msra.mxu0 0.0
        %358 = vmatprep.subr.mxu0 0.0
        %359 = vmatpush2.msra.mxu0 0.0
        %360 = vmatprep.mubr.f32.mxu0 0.0
        %361 = vmatmul.mubr.f32.gmra.mxu0 %v281
        %v362 = vpop.f32.mrf.mxu0
        %v363 = vadd.f32 %v262, %v362
        %v364 = vpop.f32.mrf.mxu0
        %365 = vmatprep.mubr.f32.mxu0 0.0
        %366 = vmatmul.mubr.f32.gmra.mxu0 %v284
        %v367 = vpop.f32.mrf.mxu0
        %v368 = vadd.f32 %v267, %v367
        %v369 = vpop.f32.mrf.mxu0
        %370 = vmatprep.mubr.f32.mxu0 0.0
        %371 = vmatmul.mubr.f32.gmra.mxu0 %v287
        %v372 = vpop.f32.mrf.mxu0
        %v373 = vadd.f32 %v272, %v372
        %v374 = vpop.f32.mrf.mxu0
        %375 = vmatprep.mubr.f32.mxu0 0.0
        %376 = vmatmul.mubr.f32.gmra.mxu0 %v290
        %v377 = vpop.f32.mrf.mxu0
        %v378 = vadd.f32 %v277, %v377
        %v379 = vpop.f32.mrf.mxu0
        %380 = vdwg.mxu0
        %v381 = vmul.f32 %v363, 0.5
        %v382 = vmul.f32 %v368, 0.5
        %v383 = vmul.f32 %v373, 0.5
        %v384 = vmul.f32 %v378, 0.5
        %v385 = vmul.f32 %v363, 0.70710677
        %v386 = vmul.f32 %v368, 0.70710677
        %v387 = vmul.f32 %v373, 0.70710677
        %v388 = vmul.f32 %v378, 0.70710677
        %v389 = verf.f32.pop %v385
        %v390 = verf.f32.pop %v386
        %v391 = verf.f32.pop %v387
        %v392 = verf.f32.pop %v388
        %v393 = vadd.f32 %v389, 1.0
        %v394 = vadd.f32 %v390, 1.0
        %v395 = vadd.f32 %v391, 1.0
        %v396 = vadd.f32 %v392, 1.0
        %v397 = vmul.f32 %v381, %v393
        %v398 = vmul.f32 %v382, %v394
        %v399 = vmul.f32 %v383, %v395
        %v400 = vmul.f32 %v384, %v396
        %402 = vset.pattern.permute.xlu0 0
        %403 = vperm.xlu0 %402, %v257
        %v404 = vpop.permute.xlu0 %403
        %vm406 = vcmask 261120
        %v408 = vsel %vm406, %v256, 0
        %410 = vmatprep.subr.mxu0 0.0
        %411 = vmatpush1.msra.mxu0 0.0
        %412 = vmatprep.subr.mxu0 0.0
        %413 = vmatpush1.msra.mxu0 0.0
        %414 = vmatprep.subr.mxu0 0.0
        %415 = vmatpush1.msra.mxu0 0.0
        %416 = vmatprep.subr.mxu0 0.0
        %417 = vmatpush1.msra.mxu0 0.0
        %418 = vmatprep.subr.mxu0 0.0
        %419 = vmatpush1.msra.mxu0 0.0
        %420 = vmatprep.subr.mxu0 0.0
        %421 = vmatpush1.msra.mxu0 0.0
        %422 = vmatprep.subr.mxu0 0.0
        %423 = vmatpush1.msra.mxu0 0.0
        %424 = vmatprep.subr.mxu0 0.0
        %425 = vmatpush1.msra.mxu0 0.0
        %426 = vmatprep.subr.mxu0 0.0
        %427 = vmatpush1.msra.mxu0 0.0
        %428 = vmatprep.subr.mxu0 0.0
        %429 = vmatpush1.msra.mxu0 0.0
        %430 = vmatprep.subr.mxu0 0.0
        %431 = vmatpush1.msra.mxu0 0.0
        %432 = vmatprep.subr.mxu0 0.0
        %433 = vmatpush1.msra.mxu0 0.0
        %434 = vmatprep.subr.mxu0 0.0
        %435 = vmatpush1.msra.mxu0 %v400
        %436 = vmatprep.subr.mxu0 0.0
        %437 = vmatpush1.msra.mxu0 %v399
        %438 = vmatprep.subr.mxu0 0.0
        %439 = vmatpush1.msra.mxu0 %v398
        %440 = vmatprep.subr.mxu0 0.0
        %441 = vmatpush1.msra.mxu0 %v397
        %442 = vmatprep.subr.mxu0 0.0
        %443 = vmatpush2.msra.mxu0 0.0
        %444 = vmatprep.subr.mxu0 0.0
        %445 = vmatpush2.msra.mxu0 0.0
        %446 = vmatprep.subr.mxu0 0.0
        %447 = vmatpush2.msra.mxu0 0.0
        %448 = vmatprep.subr.mxu0 0.0
        %449 = vmatpush2.msra.mxu0 0.0
        %450 = vmatprep.subr.mxu0 0.0
        %451 = vmatpush2.msra.mxu0 0.0
        %452 = vmatprep.subr.mxu0 0.0
        %453 = vmatpush2.msra.mxu0 0.0
        %454 = vmatprep.subr.mxu0 0.0
        %455 = vmatpush2.msra.mxu0 0.0
        %456 = vmatprep.subr.mxu0 0.0
        %457 = vmatpush2.msra.mxu0 0.0
        %458 = vmatprep.subr.mxu0 0.0
        %459 = vmatpush2.msra.mxu0 0.0
        %460 = vmatprep.subr.mxu0 0.0
        %461 = vmatpush2.msra.mxu0 0.0
        %462 = vmatprep.subr.mxu0 0.0
        %463 = vmatpush2.msra.mxu0 0.0
        %464 = vmatprep.subr.mxu0 0.0
        %465 = vmatpush2.msra.mxu0 0.0
        %466 = vmatprep.subr.mxu0 0.0
        %467 = vmatpush2.msra.mxu0 0.0
        %468 = vmatprep.subr.mxu0 0.0
        %469 = vmatpush2.msra.mxu0 0.0
        %470 = vmatprep.subr.mxu0 0.0
        %471 = vmatpush2.msra.mxu0 0.0
        %472 = vmatprep.subr.mxu0 0.0
        %473 = vmatpush2.msra.mxu0 0.0
        %474 = vmatprep.mubr.f32.mxu0 0.0
        %475 = vmatmul.mubr.f32.gmra.mxu0 %v408
        %v476 = vpop.f32.mrf.mxu0
        %v477 = vadd.f32 %v404, %v476
        %v478 = vpop.f32.mrf.mxu0
        %479 = vdwg.mxu0
        %480 = vst [vmem:[%s239] sm:$0xf] %v477
        %s481 = sand.u32 %s153, 1
        %s482 = scalar_lea.sflag [#allocation3], %s481
        %s483 = sand.u32 %s153, 1
        %s484 = smul.addr %s483, 4
        %s485 = scalar_lea.vmem [#allocation2], %s484
        // Predicated region
        $region41: #{tpu_custom_call.1} parent=39 // pred_check
          %p486 = pneg %p163
        $region42: #{tpu_custom_call.1} parent=39 // pred_check_branch
          %488 = sbr.rel (%p486) target = $region44
        $region43: #{tpu_custom_call.1} parent=39 // pred_region
          %s490 = ssub.s32 64, 64
          %491 = vsyncadd %s482, %s490
          %s492 = smul.addr %s23, 2
          %s493 = sadd.s32 %s24, %s492
          %s494 = smul.addr %s493, 64
          %s495 = scalar_lea.hbm %s5, %s494
          %s497 = sshll.u32 %s485, 4
          %s498 = int_to_ptr.vmem [resolvable:$true] %s497
          %500 = dma.vmem_to_hbm [thread:$0]  %s498, 64, %s495, %s482
        $region44: #{tpu_custom_call.1} parent=39 // pred_fallthru
          _
      $region40: #{tpu_custom_call.1} parent=5 // pred_fallthru
        _
      %p501 = scmp.le.s32.totalorder 2, %s14
      // Predicated region
      $region45: #{tpu_custom_call.1} parent=5 // pred_check
        %p502 = pneg %p501
      $region46: #{tpu_custom_call.1} parent=5 // pred_check_branch
        %504 = sbr.rel (%p502) target = $region48
      $region47: #{tpu_custom_call.1} parent=5 // pred_region
        %s505 = ssub.s32 %s14, 2
        // Predicated region
        $region49: #{tpu_custom_call.1} parent=47 // pred_check
          %p506 = pneg %p169
        $region50: #{tpu_custom_call.1} parent=47 // pred_check_branch
          %508 = sbr.rel (%p506) target = $region52
        $region51: #{tpu_custom_call.1} parent=47 // pred_region
          %s509 = sand.u32 %s154, 1
          %s510 = scalar_lea.sflag [#allocation3], %s509
          %s511 = sand.u32 %s154, 1
          %s512 = smul.addr %s511, 4
          %s513 = scalar_lea.vmem [#allocation2], %s512
          %514 = dma.done %s510, 64
        $region52: #{tpu_custom_call.1} parent=47 // pred_fallthru
          _
      $region48: #{tpu_custom_call.1} parent=5 // pred_fallthru
        _
    $region6: #{tpu_custom_call.1} parent=1 // loop_footer
      %s18 = sadd.s32 1, %s14
    $region7: #{tpu_custom_call.1} parent=1 // loop_footer_branch
      %13 = sbr.rel target = $region3
    $region8: #{tpu_custom_call.1} parent=1 // loop_exit
      _
    %515 = vsyncpa [#allocation3], 1
    %s516 = scalar_lea.sflag [#allocation3], 1
    %517 = vsyncpa %s516, 1

</llo_original>
